<compile_context>
chip_gen: v7x
topology: tpu7x:2x2x1
jax: 0.10.0
libtpu: 0.0.40
codegen_flags: <defaults>
</compile_context>

<pallas_src>
import functools
import math

import jax
import jax.numpy as jnp
from jax import lax
from jax.experimental import pallas as pl
from jax.experimental.pallas import tpu as pltpu


def _cdiv(a, b):
    return -(-a // b)


def _cos_margin_kernel(x_ref, w_ref, inv_xs_ref, inv_wn_ref, label_ref, out_ref,
                       *, sm, tile_c):
    """One (TB, TC) output tile of the CosFace head.

    x_ref:      (TB, D)  input rows (compute dtype) for this batch tile
    w_ref:      (TC, D)  weight rows (compute dtype) for this class tile
    inv_xs_ref: (TB, 1)  f32  s / ||x_row||      (torch F.normalize eps clamp)
    inv_wn_ref: (1, TC)  f32  1 / ||w_row||
    label_ref:  (TB, 1)  int32 global target class per row
    out_ref:    (TB, TC) s * (cos - m * one_hot)
    """
    # Un-normalized similarity on the MXU: NT contraction, f32 accumulate.
    cos_raw = lax.dot_general(
        x_ref[...], w_ref[...],
        dimension_numbers=(((1,), (1,)), ((), ())),
        preferred_element_type=jnp.float32,
    )  # (TB, TC)

    # s * cos(theta): s is pre-folded into the per-row x scale.
    scaled = cos_raw * inv_xs_ref[...] * inv_wn_ref[...]

    # Subtract s*m only at the target class of each row.
    tb, tc = out_ref.shape
    col0 = pl.program_id(1) * tile_c  # global class index of this tile's first column
    col_ids = col0 + lax.broadcasted_iota(jnp.int32, (tb, tc), 1)
    one_hot = col_ids == label_ref[...]  # label broadcasts over columns

    out = scaled - jnp.where(one_hot, jnp.float32(sm), jnp.float32(0.0))
    out_ref[...] = out.astype(out_ref.dtype)


def _vmem_budget_and_limit():
    """Generation-aware VMEM sizing (128 MiB on v5e/v6e, 64 MiB on v7x)."""
    cap = 64 * 1024 * 1024  # conservative fallback = v7x per-TensorCore VMEM
    try:
        cap = int(pltpu.get_tpu_info().vmem_capacity_bytes)
    except Exception:
        pass
    budget = int(cap * 0.70)   # pipelined tiles + modeled kernel temporaries
    limit = int(cap * 0.80)    # Mosaic scoped-VMEM ceiling, with headroom
    return budget, limit


def _choose_tiles(B, C, D, x_itemsize, w_itemsize, out_itemsize, vmem_budget,
                  max_tc=2048, tc_align=256):
    """Pick (TB, TC).

    Preference order: (1) whole batch resident -> W streamed from HBM once,
    (2) large lane-dense class tiles (256-aligned: fills the 2x256x256 MXU on
    v6e/v7x and stays 128-aligned for v5e), shrunk until the VMEM budget fits.
    """
    if C <= tc_align:
        tc = C                                  # full dim (no padding below one tile)
    else:
        tc = max(tc_align, (min(max_tc, C) // tc_align) * tc_align)

    def footprint(tb_, tc_):
        # Double-buffered pipelined blocks (inv/label tiles pad to 8x128 tiles).
        pipelined = 2 * (tb_ * D * x_itemsize
                         + tc_ * D * w_itemsize
                         + tb_ * tc_ * out_itemsize
                         + tb_ * 128 * 4          # s/||x||  (lane-padded)
                         + 8 * tc_ * 4            # 1/||w||  (sublane-padded)
                         + tb_ * 128 * 4)         # labels   (lane-padded)
        # Kernel-internal temporaries: cos_raw, scaled, col iota, one-hot
        # select, f32 result before the store cast.
        temps = 5 * tb_ * tc_ * 4
        return pipelined + temps

    tb = B  # whole batch resident -> single HBM pass over W
    while footprint(tb, tc) > vmem_budget and tc > 128:
        tc = max(128, ((tc // 2) // 128) * 128)
    while footprint(tb, tc) > vmem_budget and tb > 8:
        tb = max(8, ((tb // 2) // 8) * 8)

    # Megacore (v7x, 2 TCs): when the batch axis has a single tile, the class
    # axis is the only shardable one — keep its tile count even / > 1.
    if _cdiv(B, tb) == 1 and C >= 256:
        n_c = _cdiv(C, tc)
        if n_c == 1:
            tc = ((_cdiv(C, 2) + 127) // 128) * 128
        elif n_c % 2 == 1:
            cand = ((_cdiv(C, n_c + 1) + 127) // 128) * 128
            if cand >= 128 and _cdiv(C, cand) % 2 == 0:
                tc = cand
    return tb, tc


def cos_margin_product(x, weight, label, *, s=64.0, m=0.4,
                       compute_dtype="auto", out_dtype=jnp.float32):
    """x: (B, D); weight: (C, D); label: (B,) int -> (B, C) logits.

    compute_dtype: "auto" (default) casts f32 MXU operands to bfloat16 once in
    the wrapper (fast MXU path, W streamed at 2 B/elem); None keeps exact f32.
    Norms, accumulation and the epilogue are always f32.
    """
    B, D = x.shape
    C, D2 = weight.shape
    assert D == D2, "weight must be (out_features, in_features)"

    # --- hoisted per-row inverse norms (torch F.normalize eps clamp) --------
    eps = jnp.float32(1e-12)
    x32 = x.astype(jnp.float32)
    w32 = weight.astype(jnp.float32)
    inv_xs = (jnp.float32(s)
              / jnp.maximum(jnp.sqrt(jnp.sum(x32 * x32, axis=-1, keepdims=True)), eps))   # (B, 1)
    inv_wn = (jnp.float32(1.0)
              / jnp.maximum(jnp.sqrt(jnp.sum(w32 * w32, axis=-1, keepdims=True)), eps)).T  # (1, C)

    # --- cast MXU operands once, before DMA ---------------------------------
    if compute_dtype == "auto":
        compute_dtype = jnp.bfloat16 if x.dtype == jnp.float32 else None
    x_mm = x if compute_dtype is None else x.astype(compute_dtype)
    w_mm = weight if compute_dtype is None else weight.astype(compute_dtype)
    # TODO(synk): optional fp8 weight path on v7x (fold per-row quant scale into inv_wn).

    label2d = label.astype(jnp.int32).reshape(B, 1)

    vmem_budget, vmem_limit = _vmem_budget_and_limit()
    tb, tc = _choose_tiles(
        B, C, D,
        x_itemsize=jnp.dtype(x_mm.dtype).itemsize,
        w_itemsize=jnp.dtype(w_mm.dtype).itemsize,
        out_itemsize=jnp.dtype(out_dtype).itemsize,
        vmem_budget=vmem_budget,
    )
    grid = (pl.cdiv(B, tb), pl.cdiv(C, tc))

    kernel = functools.partial(_cos_margin_kernel, sm=float(s) * float(m), tile_c=tc)

    return pl.pallas_call(
        kernel,
        out_shape=jax.ShapeDtypeStruct((B, C), out_dtype),
        grid=grid,
        in_specs=[
            pl.BlockSpec((tb, D), lambda bi, ci: (bi, 0)),   # x: batch-tiled, D whole
            pl.BlockSpec((tc, D), lambda bi, ci: (ci, 0)),   # W: class-tiled, D whole
            pl.BlockSpec((tb, 1), lambda bi, ci: (bi, 0)),   # s / ||x_row||
            pl.BlockSpec((1, tc), lambda bi, ci: (0, ci)),   # 1 / ||w_row||
            pl.BlockSpec((tb, 1), lambda bi, ci: (bi, 0)),   # labels (tiny)
        ],
        out_specs=pl.BlockSpec((tb, tc), lambda bi, ci: (bi, ci)),
        compiler_params=pltpu.CompilerParams(
            dimension_semantics=("parallel", "parallel"),
            vmem_limit_bytes=vmem_limit,
        ),
    )(x_mm, w_mm, inv_xs, inv_wn, label2d)


if __name__ == "__main__":
    # Small shapes consistent with the module: in_features=32, out_features=128, batch=8.
    in_features = 32
    out_features = 128
    batch = 8
    s, m = 64.0, 0.4

    key = jax.random.PRNGKey(0)
    kx, kw, kl = jax.random.split(key, 3)

    x = jax.random.normal(kx, (batch, in_features), dtype=jnp.float32)

    # Deterministic Xavier-uniform init for the weight (out_features, in_features).
    bound = math.sqrt(6.0 / (in_features + out_features))
    weight = jax.random.uniform(
        kw, (out_features, in_features), minval=-bound, maxval=bound, dtype=jnp.float32
    )

    label = jax.random.randint(kl, (batch,), 0, out_features, dtype=jnp.int32)

    # Exact f32 path.
    out_exact = cos_margin_product(x, weight, label, s=s, m=m, compute_dtype=None)
    out_exact = jax.block_until_ready(out_exact)

    # Default fast path (bf16 MXU operands, f32 accumulate / epilogue).
    out_fast = cos_margin_product(x, weight, label, s=s, m=m)
    out_fast = jax.block_until_ready(out_fast)

    # Pure-JAX reference (independent formulation: sqrt + divide).
    xn = x / jnp.maximum(jnp.linalg.norm(x, axis=-1, keepdims=True), 1e-12)
    wn = weight / jnp.maximum(jnp.linalg.norm(weight, axis=-1, keepdims=True), 1e-12)
    cos_t = xn @ wn.T
    phi = cos_t - m
    one_hot = jax.nn.one_hot(label, out_features, dtype=jnp.int32)
    ref = jnp.where(one_hot == 1, phi, cos_t) * s

    assert jnp.allclose(out_exact, ref, atol=1e-3, rtol=1e-3), "f32 path mismatch vs reference"
    # bf16 MXU operands at s=64 carry ~0.1-0.3 absolute error in the logits.
    assert jnp.allclose(out_fast, ref, atol=0.5, rtol=2e-2), "bf16 path mismatch vs reference"

    print("KERNEL_OK")
</pallas_src>

<mosaic_0001>
module attributes {stable_mosaic.version = 11 : i64} {
  func.func @_cos_margin_kernel(%arg0: i32, %arg1: i32, %arg2: memref<8x32xf32, #tpu.memory_space<vmem>>, %arg3: memref<128x32xf32, #tpu.memory_space<vmem>>, %arg4: memref<8x1xf32, #tpu.memory_space<vmem>>, %arg5: memref<1x128xf32, #tpu.memory_space<vmem>>, %arg6: memref<8x1xi32, #tpu.memory_space<vmem>>, %arg7: memref<8x128xf32, #tpu.memory_space<vmem>>) attributes {dimension_semantics = [#tpu.dimension_semantics<parallel>, #tpu.dimension_semantics<parallel>], iteration_bounds = array<i64: 1, 1>, scalar_prefetch = 0 : i64, scratch_operands = 0 : i64, tpu.core_type = #tpu.core_type<tc>, window_params = [{transform_indices = @transform_0, window_bounds = array<i64: 8, 32>}, {transform_indices = @transform_1, window_bounds = array<i64: 128, 32>}, {transform_indices = @transform_2, window_bounds = array<i64: 8, 1>}, {transform_indices = @transform_3, window_bounds = array<i64: 1, 128>}, {transform_indices = @transform_4, window_bounds = array<i64: 8, 1>}, {transform_indices = @transform_5, window_bounds = array<i64: 8, 128>}]} {
    %c0 = arith.constant 0 : index
    %c0_0 = arith.constant 0 : index
    %0 = vector.load %arg2[%c0, %c0_0] : memref<8x32xf32, #tpu.memory_space<vmem>>, vector<8x32xf32>
    %c0_1 = arith.constant 0 : index
    %c0_2 = arith.constant 0 : index
    %1 = vector.load %arg3[%c0_1, %c0_2] : memref<128x32xf32, #tpu.memory_space<vmem>>, vector<128x32xf32>
    %cst = arith.constant dense<0.000000e+00> : vector<8x128xf32>
    %2 = tpu.matmul %0, %1, %cst {dimension_numbers = #tpu.dot_dimension_numbers<[1], [1], [0], [0], [0, 0, 1, 0], [], []>} : vector<8x32xf32>, vector<128x32xf32>, vector<8x128xf32> -> vector<8x128xf32>
    %c0_3 = arith.constant 0 : index
    %c0_4 = arith.constant 0 : index
    %3 = vector.load %arg4[%c0_3, %c0_4] : memref<8x1xf32, #tpu.memory_space<vmem>>, vector<8x1xf32>
    %4 = vector.broadcast %3 : vector<8x1xf32> to vector<8x128xf32>
    %5 = arith.mulf %2, %4 : vector<8x128xf32>
    %c0_5 = arith.constant 0 : index
    %c0_6 = arith.constant 0 : index
    %6 = vector.load %arg5[%c0_5, %c0_6] : memref<1x128xf32, #tpu.memory_space<vmem>>, vector<1x128xf32>
    %7 = vector.broadcast %6 : vector<1x128xf32> to vector<8x128xf32>
    %8 = arith.mulf %5, %7 : vector<8x128xf32>
    %c128_i32 = arith.constant 128 : i32
    %9 = arith.muli %arg1, %c128_i32 : i32
    %10 = tpu.iota {dimensions = array<i32: 1>} : vector<8x128xi32>
    %11 = vector.broadcast %9 : i32 to vector<8x128xi32>
    %12 = arith.addi %11, %10 : vector<8x128xi32>
    %c0_7 = arith.constant 0 : index
    %c0_8 = arith.constant 0 : index
    %13 = vector.load %arg6[%c0_7, %c0_8] : memref<8x1xi32, #tpu.memory_space<vmem>>, vector<8x1xi32>
    %14 = vector.broadcast %13 : vector<8x1xi32> to vector<8x128xi32>
    %15 = arith.cmpi eq, %12, %14 : vector<8x128xi32>
    %cst_9 = arith.constant 2.560000e+01 : f32
    %cst_10 = arith.constant 0.000000e+00 : f32
    %16 = vector.broadcast %cst_9 : f32 to vector<8x128xf32>
    %17 = vector.broadcast %cst_10 : f32 to vector<8x128xf32>
    %18 = arith.select %15, %16, %17 : vector<8x128xi1>, vector<8x128xf32>
    %19 = arith.subf %8, %18 : vector<8x128xf32>
    %c0_11 = arith.constant 0 : index
    %c0_12 = arith.constant 0 : index
    %20 = vector.load %arg7[%c0_11, %c0_12] : memref<8x128xf32, #tpu.memory_space<vmem>>, vector<8x128xf32>
    tpu.vector_store %arg7[%c0_11, %c0_12], %19 {strides = array<i32>} : memref<8x128xf32, #tpu.memory_space<vmem>>, vector<8x128xf32>,
    return
  }
  func.func @transform_0(%arg0: i32, %arg1: i32) -> (i32, i32) {
    %c0_i32 = arith.constant 0 : i32
    %c0_i32_0 = arith.constant 0 : i32
    return %arg0, %c0_i32 : i32, i32
  }
  func.func @transform_1(%arg0: i32, %arg1: i32) -> (i32, i32) {
    %c0_i32 = arith.constant 0 : i32
    %c0_i32_0 = arith.constant 0 : i32
    return %arg1, %c0_i32 : i32, i32
  }
  func.func @transform_2(%arg0: i32, %arg1: i32) -> (i32, i32) {
    %c0_i32 = arith.constant 0 : i32
    %c0_i32_0 = arith.constant 0 : i32
    return %arg0, %c0_i32 : i32, i32
  }
  func.func @transform_3(%arg0: i32, %arg1: i32) -> (i32, i32) {
    %c0_i32 = arith.constant 0 : i32
    %c0_i32_0 = arith.constant 0 : i32
    return %c0_i32, %arg1 : i32, i32
  }
  func.func @transform_4(%arg0: i32, %arg1: i32) -> (i32, i32) {
    %c0_i32 = arith.constant 0 : i32
    %c0_i32_0 = arith.constant 0 : i32
    return %arg0, %c0_i32 : i32, i32
  }
  func.func @transform_5(%arg0: i32, %arg1: i32) -> (i32, i32) {
    %c0_i32 = arith.constant 0 : i32
    return %arg0, %arg1 : i32, i32
  }
}

</mosaic_0001>

<llo_original>
// kernel: tpu_custom_call.1
$region0: #{tpu_custom_call.1}
  #allocation0 [shape = 'u32[]', space=smem, size = 0x4, offset = 0x4, fixed_abs, tag = 'smem constant byte address 0x4 - core index']
  #allocation1 [shape = 'u32[144,128]{1,0:T(1,128)}', space=vmem, size = 0x12000, scoped, tag = 'internal scratch']
  %s0 = inlined_call_operand.vmem [shape: f32[8,32], index: 0, kind: input, shape index: {}]
  %s1 = inlined_call_operand.vmem [shape: f32[128,32], index: 1, kind: input, shape index: {}]
  %s2 = inlined_call_operand.vmem [shape: f32[8,1], index: 2, kind: input, shape index: {}]
  %s3 = inlined_call_operand.vmem [shape: f32[1,128], index: 3, kind: input, shape index: {}]
  %s4 = inlined_call_operand.vmem [shape: s32[8,1], index: 4, kind: input, shape index: {}]
  %s5 = inlined_call_operand.hbm [shape: f32[8,128], index: 5, kind: output, shape index: {}]
  %s6 = sld [smem:[#allocation0]]
  $region30: #{tpu_custom_call.1} parent=0
    _
  %s8 = ssub.s32 1, %s6
  %s9 = scalar_select 0, %s8, %s6
  $region1: #{tpu_custom_call.1} parent=0
    #allocation2 [shape = 'u8[4096]{0}', space=vmem, size = 0x1000, scoped, tag = 'output window, operand 0, single buffered']
    #allocation3 [shape = 's32[1]{0}', space=sflag, size = 0x4, scoped, tag = 'scoped memory for tpu_custom_call.1']
    %10 = vsyncpa [#allocation3], 0
    // Predicated region
    $region2: #{tpu_custom_call.1} parent=1 // pred_check
      _
    $region3: #{tpu_custom_call.1} parent=1 // pred_check_branch
      %12 = sbr.rel (0) target = $region5
    $region4: #{tpu_custom_call.1} parent=1 // pred_region
      _
    $region5: #{tpu_custom_call.1} parent=1 // pred_fallthru
      _
    // Predicated region
    $region6: #{tpu_custom_call.1} parent=1 // pred_check
      _
    $region7: #{tpu_custom_call.1} parent=1 // pred_check_branch
      %14 = sbr.rel (0) target = $region9
    $region8: #{tpu_custom_call.1} parent=1 // pred_region
      _
    $region9: #{tpu_custom_call.1} parent=1 // pred_fallthru
      _
    // Predicated region
    $region10: #{tpu_custom_call.1} parent=1 // pred_check
      _
    $region11: #{tpu_custom_call.1} parent=1 // pred_check_branch
      %16 = sbr.rel (0) target = $region13
    $region12: #{tpu_custom_call.1} parent=1 // pred_region
      _
    $region13: #{tpu_custom_call.1} parent=1 // pred_fallthru
      _
    // Predicated region
    $region14: #{tpu_custom_call.1} parent=1 // pred_check
      _
    $region15: #{tpu_custom_call.1} parent=1 // pred_check_branch
      %18 = sbr.rel (0) target = $region17
    $region16: #{tpu_custom_call.1} parent=1 // pred_region
      _
    $region17: #{tpu_custom_call.1} parent=1 // pred_fallthru
      _
    // Predicated region
    $region18: #{tpu_custom_call.1} parent=1 // pred_check
      _
    $region19: #{tpu_custom_call.1} parent=1 // pred_check_branch
      %20 = sbr.rel (0) target = $region21
    $region20: #{tpu_custom_call.1} parent=1 // pred_region
      _
    $region21: #{tpu_custom_call.1} parent=1 // pred_fallthru
      _
    %v21 = vld [vmem:[%s0] sm:$0xff]
    %v22 = vld [vmem:[%s1] sm:$0xff]
    %v23 = vld [vmem:[%s1 + $0x8] sm:$0xff]
    %v24 = vld [vmem:[%s1 + $0x10] sm:$0xff]
    %v25 = vld [vmem:[%s1 + $0x18] sm:$0xff]
    %v26 = vld [vmem:[%s1 + $0x20] sm:$0xff]
    %v27 = vld [vmem:[%s1 + $0x28] sm:$0xff]
    %v28 = vld [vmem:[%s1 + $0x30] sm:$0xff]
    %v29 = vld [vmem:[%s1 + $0x38] sm:$0xff]
    %v30 = vld [vmem:[%s1 + $0x40] sm:$0xff]
    %v31 = vld [vmem:[%s1 + $0x48] sm:$0xff]
    %v32 = vld [vmem:[%s1 + $0x50] sm:$0xff]
    %v33 = vld [vmem:[%s1 + $0x58] sm:$0xff]
    %v34 = vld [vmem:[%s1 + $0x60] sm:$0xff]
    %v35 = vld [vmem:[%s1 + $0x68] sm:$0xff]
    %v36 = vld [vmem:[%s1 + $0x70] sm:$0xff]
    %v37 = vld [vmem:[%s1 + $0x78] sm:$0xff]
    %vm38 = vcmask 261120
    %v40 = vsel %vm38, %v21, 0
    %v43 = vsel %vm38, %v22, 0
    %v46 = vsel %vm38, %v23, 0
    %v49 = vsel %vm38, %v24, 0
    %v52 = vsel %vm38, %v25, 0
    %v55 = vsel %vm38, %v26, 0
    %v58 = vsel %vm38, %v27, 0
    %v61 = vsel %vm38, %v28, 0
    %v64 = vsel %vm38, %v29, 0
    %v67 = vsel %vm38, %v30, 0
    %v70 = vsel %vm38, %v31, 0
    %v73 = vsel %vm38, %v32, 0
    %v76 = vsel %vm38, %v33, 0
    %v79 = vsel %vm38, %v34, 0
    %v82 = vsel %vm38, %v35, 0
    %v85 = vsel %vm38, %v36, 0
    %v88 = vsel %vm38, %v37, 0
    %90 = vmatprep.subr.mxu0 0.0
    %91 = vmatpush1.xpose.msra.mxu0 %v43
    %92 = vmatprep.subr.mxu0 0.0
    %93 = vmatpush1.xpose.msra.mxu0 %v46
    %94 = vmatprep.subr.mxu0 0.0
    %95 = vmatpush1.xpose.msra.mxu0 %v49
    %96 = vmatprep.subr.mxu0 0.0
    %97 = vmatpush1.xpose.msra.mxu0 %v52
    %98 = vmatprep.subr.mxu0 0.0
    %99 = vmatpush1.xpose.msra.mxu0 %v55
    %100 = vmatprep.subr.mxu0 0.0
    %101 = vmatpush1.xpose.msra.mxu0 %v58
    %102 = vmatprep.subr.mxu0 0.0
    %103 = vmatpush1.xpose.msra.mxu0 %v61
    %104 = vmatprep.subr.mxu0 0.0
    %105 = vmatpush1.xpose.msra.mxu0 %v64
    %106 = vmatprep.subr.mxu0 0.0
    %107 = vmatpush1.xpose.msra.mxu0 %v67
    %108 = vmatprep.subr.mxu0 0.0
    %109 = vmatpush1.xpose.msra.mxu0 %v70
    %110 = vmatprep.subr.mxu0 0.0
    %111 = vmatpush1.xpose.msra.mxu0 %v73
    %112 = vmatprep.subr.mxu0 0.0
    %113 = vmatpush1.xpose.msra.mxu0 %v76
    %114 = vmatprep.subr.mxu0 0.0
    %115 = vmatpush1.xpose.msra.mxu0 %v79
    %116 = vmatprep.subr.mxu0 0.0
    %117 = vmatpush1.xpose.msra.mxu0 %v82
    %118 = vmatprep.subr.mxu0 0.0
    %119 = vmatpush1.xpose.msra.mxu0 %v85
    %120 = vmatprep.subr.mxu0 0.0
    %121 = vmatpush1.xpose.msra.mxu0 %v88
    %122 = vmatprep.subr.mxu0 0.0
    %123 = vmatpush1.xpose.msra.mxu0 0.0
    %124 = vmatprep.subr.mxu0 0.0
    %125 = vmatpush1.xpose.msra.mxu0 0.0
    %126 = vmatprep.subr.mxu0 0.0
    %127 = vmatpush1.xpose.msra.mxu0 0.0
    %128 = vmatprep.subr.mxu0 0.0
    %129 = vmatpush1.xpose.msra.mxu0 0.0
    %130 = vmatprep.subr.mxu0 0.0
    %131 = vmatpush1.xpose.msra.mxu0 0.0
    %132 = vmatprep.subr.mxu0 0.0
    %133 = vmatpush1.xpose.msra.mxu0 0.0
    %134 = vmatprep.subr.mxu0 0.0
    %135 = vmatpush1.xpose.msra.mxu0 0.0
    %136 = vmatprep.subr.mxu0 0.0
    %137 = vmatpush1.xpose.msra.mxu0 0.0
    %138 = vmatprep.subr.mxu0 0.0
    %139 = vmatpush1.xpose.msra.mxu0 0.0
    %140 = vmatprep.subr.mxu0 0.0
    %141 = vmatpush1.xpose.msra.mxu0 0.0
    %142 = vmatprep.subr.mxu0 0.0
    %143 = vmatpush1.xpose.msra.mxu0 0.0
    %144 = vmatprep.subr.mxu0 0.0
    %145 = vmatpush1.xpose.msra.mxu0 0.0
    %146 = vmatprep.subr.mxu0 0.0
    %147 = vmatpush1.xpose.msra.mxu0 0.0
    %148 = vmatprep.subr.mxu0 0.0
    %149 = vmatpush1.xpose.msra.mxu0 0.0
    %150 = vmatprep.subr.mxu0 0.0
    %151 = vmatpush1.xpose.msra.mxu0 0.0
    %152 = vmatprep.subr.mxu0 0.0
    %153 = vmatpush1.xpose.msra.mxu0 0.0
    %154 = vmatprep.mubr.f32.mxu0 0.0
    %155 = vmatmul.mubr.f32.gmra.mrb[0].mxu0 %v40
    %v156 = vpop.f32.mrb[0].mxu0
    %v157 = vadd.f32 0.0, %v156
    %v158 = vpop.f32.mrb[0].mxu0
    %159 = vdwg.mxu0
    %v160 = vld [vmem:[%s2] sm:$0xff]
    %162 = vset.pattern.permute.xlu0 0
    %163 = vperm.xlu0 %162, %v160
    %v164 = vpop.permute.xlu0 %163
    %v166 = vmul.f32 %v157, %v164
    %v167 = vld [vmem:[%s3] sm:$0x1]
    %v169 = vlaneseq
    %v170 = vshrl.u32 %v169, 7
    %v171 = vsub.s32 0, %v170
    %v172 = vrot.slane %v167, %v171
    %v174 = vmul.f32 %v166, %v172
    %s175 = smul.u32 0, 128
    %v176 = vlaneseq
    %v177 = vand.u32 %v176, 127
    %v178 = vstv %s175
    %v179 = vadd.s32 %v178, %v177
    %v180 = vld [vmem:[%s4] sm:$0xff]
    %181 = vset.pattern.permute.xlu0 0
    %182 = vperm.xlu0 %181, %v180
    %v183 = vpop.permute.xlu0 %182
    %vm184 = vcmp.eq.s32.totalorder %v179, %v183
    %v185 = vsel %vm184, 25.6, 0.0
    %v186 = vsub.f32 %v174, %v185
    %187 = vst [vmem:[#allocation2] sm:$0xff] %v186
    // Predicated region
    $region22: #{tpu_custom_call.1} parent=1 // pred_check
      _
    $region23: #{tpu_custom_call.1} parent=1 // pred_check_branch
      %189 = sbr.rel (0) target = $region25
    $region24: #{tpu_custom_call.1} parent=1 // pred_region
      %s191 = ssub.s32 128, 128
      %192 = vsyncadd [#allocation3], %s191
      %s194 = sshll.u32 [#allocation2], 4
      %s195 = int_to_ptr.vmem [resolvable:$true] %s194
      %197 = dma.vmem_to_hbm [thread:$0]  %s195, 128, %s5, [#allocation3]
    $region25: #{tpu_custom_call.1} parent=1 // pred_fallthru
      _
    // Predicated region
    $region26: #{tpu_custom_call.1} parent=1 // pred_check
      _
    $region27: #{tpu_custom_call.1} parent=1 // pred_check_branch
      %199 = sbr.rel (0) target = $region29
    $region28: #{tpu_custom_call.1} parent=1 // pred_region
      %200 = dma.done [#allocation3], 128
    $region29: #{tpu_custom_call.1} parent=1 // pred_fallthru
      _
    %201 = vsyncpa [#allocation3], 1

</llo_original>
